<compile_context>
chip_gen: v5e
topology: v5e:2x2
jax: 0.10.0
libtpu: 0.0.40
codegen_flags: <defaults>
</compile_context>

<pallas_src>
import functools

import jax
import jax.numpy as jnp
from jax.experimental import pallas as pl
from jax.experimental.pallas import tpu as pltpu

_SUBLANE = 8
_MAX_TILE_B = 1024
# Conservative double-buffered-input budget: fits v5e's 16 MiB scoped VMEM
# default with plenty of headroom (weight/output/bias buffers are tiny).
_VMEM_INPUT_BUDGET_BYTES = 8 << 20


def _value_estimator_kernel(x_ref, w_ref, b_ref, o_ref):
    # x_ref: [TILE_B, N] f32 in VMEM (streamed)
    # w_ref: [N, 1]      f32 in VMEM (resident across all grid steps)
    # b_ref: [1, 1]      f32 in SMEM (scalar)
    # o_ref: [TILE_B, 1] f32 in VMEM
    o_ref[...] = (
        jnp.dot(x_ref[...], w_ref[...], preferred_element_type=jnp.float32)
        + b_ref[0, 0]
    )


def _round_up(x, m):
    return ((x + m - 1) // m) * m


def _pick_tile_b(batch, n):
    """Largest row tile whose double-buffered input fits the VMEM budget."""
    by_budget = _VMEM_INPUT_BUDGET_BYTES // (2 * n * 4)
    tile_b = min(_MAX_TILE_B, by_budget)
    tile_b = max(_SUBLANE, (tile_b // _SUBLANE) * _SUBLANE)
    return tile_b


@jax.jit
def _pallas_forward(state, weight, bias):
    """state: [B, N] f32; weight: [1, N] f32 (PyTorch layout); bias: [1] f32."""
    B, N = state.shape
    tile_b = _pick_tile_b(B, N)

    if B <= tile_b:
        # Single block; block_shape == full array dims, so no (8,128) issue
        # and no padding needed.
        tile_b = B
        b_pad = B
    else:
        # Pad B to a multiple of tile_b so blocks stay exact and the grid has
        # >= 2 steps (v7x megacore sharding + i+1 prefetch overlap).
        b_pad = _round_up(B, tile_b)

    x = state.astype(jnp.float32)
    if b_pad != B:
        x = jnp.pad(x, ((0, b_pad - B), (0, 0)))

    w_col = weight.reshape(N, 1).astype(jnp.float32)   # MXU-friendly column
    bias2d = bias.reshape(1, 1).astype(jnp.float32)    # SMEM scalar

    grid = (b_pad // tile_b,)
    out = pl.pallas_call(
        _value_estimator_kernel,
        out_shape=jax.ShapeDtypeStruct((b_pad, 1), jnp.float32),
        grid=grid,
        in_specs=[
            pl.BlockSpec((tile_b, N), lambda i: (i, 0)),           # state tile
            pl.BlockSpec((N, 1), lambda i: (0, 0)),                # weight (resident)
            pl.BlockSpec(memory_space=pltpu.MemorySpace.SMEM),     # bias scalar
        ],
        out_specs=pl.BlockSpec((tile_b, 1), lambda i: (i, 0)),
        compiler_params=pltpu.CompilerParams(
            dimension_semantics=("parallel",),
        ),
        cost_estimate=pl.CostEstimate(
            flops=2 * b_pad * N,
            transcendentals=0,
            bytes_accessed=(b_pad * N + N + 1 + b_pad) * 4,
        ),
    )(x, w_col, bias2d)

    if b_pad != B:
        out = out[:B]
    return out


def value_estimator_forward(state, weight, bias, *, force_pallas=False):
    """Dispatch wrapper.

    For tiny problems the ~0.35 us/step pipeline overhead + kernel dispatch
    dominate, so plain XLA is cheaper; large RL-rollout batches go through the
    Pallas kernel.
    """
    B, N = state.shape
    if not force_pallas and B * N <= 16384:
        return (state.astype(jnp.float32) @ weight.reshape(N, 1).astype(jnp.float32)
                + bias.astype(jnp.float32))
    return _pallas_forward(state, weight, bias)


if __name__ == "__main__":
    # Small synthetic "environment": observation_space.n = 32, batch of 8 states.
    B, N = 8, 32
    key = jax.random.PRNGKey(0)
    k_state, k_weight, k_bias = jax.random.split(key, 3)

    state = jax.random.normal(k_state, (B, N), dtype=jnp.float32)

    # --- Correctness check with a NONZERO weight so the MXU contraction path
    #     is actually exercised (a zero weight would only test the bias add). ---
    weight_rand = jax.random.normal(k_weight, (1, N), dtype=jnp.float32)
    bound = 1.0 / jnp.sqrt(jnp.float32(N))
    bias = jax.random.uniform(
        k_bias, (1,), dtype=jnp.float32, minval=-bound, maxval=bound
    )

    out = value_estimator_forward(state, weight_rand, bias, force_pallas=True)
    out = jax.block_until_ready(out)
    ref = state @ weight_rand.T + bias
    assert out.shape == (B, 1)
    assert jnp.allclose(out, ref, atol=1e-5), "mismatch vs reference (random W)"

    # --- Module-default initialization path:
    #     weight_initializer=torch.nn.init.zeros_ -> weight all zeros. ---
    weight_zero = jnp.zeros((1, N), dtype=jnp.float32)
    out0 = jax.block_until_ready(
        value_estimator_forward(state, weight_zero, bias, force_pallas=True)
    )
    ref0 = state @ weight_zero.T + bias
    assert jnp.allclose(out0, ref0, atol=1e-6), "mismatch vs reference (zero W)"

    # --- Larger, non-multiple batch: exercises padding + multi-step grid. ---
    B2 = 2500
    state2 = jax.random.normal(jax.random.PRNGKey(1), (B2, N), dtype=jnp.float32)
    out2 = jax.block_until_ready(
        value_estimator_forward(state2, weight_rand, bias, force_pallas=True)
    )
    ref2 = state2 @ weight_rand.T + bias
    assert out2.shape == (B2, 1)
    assert jnp.allclose(out2, ref2, atol=1e-4), "mismatch vs reference (padded batch)"

    print("KERNEL_OK")
</pallas_src>

<mosaic_0001>
module attributes {stable_mosaic.version = 11 : i64} {
  func.func @_value_estimator_kernel(%arg0: i32, %arg1: memref<8x32xf32, #tpu.memory_space<vmem>>, %arg2: memref<32x1xf32, #tpu.memory_space<vmem>>, %arg3: memref<1x1xf32, #tpu.memory_space<smem>>, %arg4: memref<8x1xf32, #tpu.memory_space<vmem>>) attributes {dimension_semantics = [#tpu.dimension_semantics<parallel>], iteration_bounds = array<i64: 1>, scalar_prefetch = 0 : i64, scratch_operands = 0 : i64, tpu.core_type = #tpu.core_type<tc>, window_params = [{transform_indices = @transform_0, window_bounds = array<i64: 8, 32>}, {pipeline_mode = #tpu.pipeline_mode<synchronous>, transform_indices = @transform_1, window_bounds = array<i64: 32, 1>}, {transform_indices = @transform_2, window_bounds = array<i64: 1, 1>}, {transform_indices = @transform_3, window_bounds = array<i64: 8, 1>}]} {
    %c0 = arith.constant 0 : index
    %c0_0 = arith.constant 0 : index
    %0 = vector.load %arg1[%c0, %c0_0] : memref<8x32xf32, #tpu.memory_space<vmem>>, vector<8x32xf32>
    %c0_1 = arith.constant 0 : index
    %c0_2 = arith.constant 0 : index
    %1 = vector.load %arg2[%c0_1, %c0_2] : memref<32x1xf32, #tpu.memory_space<vmem>>, vector<32x1xf32>
    %cst = arith.constant dense<0.000000e+00> : vector<8x1xf32>
    %2 = tpu.matmul %0, %1, %cst {dimension_numbers = #tpu.dot_dimension_numbers<[1], [0], [0], [1], [0, 0, 1, 1], [], []>} : vector<8x32xf32>, vector<32x1xf32>, vector<8x1xf32> -> vector<8x1xf32>
    %c0_3 = arith.constant 0 : index
    %c0_4 = arith.constant 0 : index
    %3 = memref.load %arg3[%c0_3, %c0_4] : memref<1x1xf32, #tpu.memory_space<smem>>
    %4 = vector.broadcast %3 : f32 to vector<8x1xf32>
    %5 = arith.addf %2, %4 : vector<8x1xf32>
    %c0_5 = arith.constant 0 : index
    %c0_6 = arith.constant 0 : index
    %6 = vector.load %arg4[%c0_5, %c0_6] : memref<8x1xf32, #tpu.memory_space<vmem>>, vector<8x1xf32>
    tpu.vector_store %arg4[%c0_5, %c0_6], %5 {strides = array<i32>} : memref<8x1xf32, #tpu.memory_space<vmem>>, vector<8x1xf32>,
    return
  }
  func.func @transform_0(%arg0: i32) -> (i32, i32) {
    %c0_i32 = arith.constant 0 : i32
    %c0_i32_0 = arith.constant 0 : i32
    return %arg0, %c0_i32 : i32, i32
  }
  func.func @transform_1(%arg0: i32) -> (i32, i32) {
    %c0_i32 = arith.constant 0 : i32
    %c0_i32_0 = arith.constant 0 : i32
    %c0_i32_1 = arith.constant 0 : i32
    return %c0_i32, %c0_i32_0 : i32, i32
  }
  func.func @transform_2(%arg0: i32) -> (i32, i32) {
    %c0_i32 = arith.constant 0 : i32
    %c0_i32_0 = arith.constant 0 : i32
    %c0_i32_1 = arith.constant 0 : i32
    return %c0_i32, %c0_i32_0 : i32, i32
  }
  func.func @transform_3(%arg0: i32) -> (i32, i32) {
    %c0_i32 = arith.constant 0 : i32
    %c0_i32_0 = arith.constant 0 : i32
    return %arg0, %c0_i32 : i32, i32
  }
}

</mosaic_0001>

<llo_original>
// kernel: _pallas_forward.1
$region0: #{_pallas_forward.1}
  #allocation0 [shape = 'u32[]', space=smem, size = 0x4, offset = 0x4, fixed_abs, tag = 'smem constant byte address 0x4 - core index']
  #allocation1 [shape = 'u32[72,128]{1,0:T(1,128)}', space=vmem, size = 0x9000, scoped, tag = 'internal scratch']
  #allocation2 [shape = 'f32[1,1]{1,0:T(1,128)S(6)}', space=smem, size = 0x200, scoped, tag = 'scoped memory for _pallas_forward.1']
  %s0 = inlined_call_operand.vmem [shape: f32[8,32], index: 0, kind: input, shape index: {}]
  %s1 = inlined_call_operand.vmem [shape: f32[32,1], index: 1, kind: input, shape index: {}]
  %s2 = inlined_call_operand.<no memory space> [shape: f32[1,1], index: 2, kind: input, shape index: {}]
  %s3 = inlined_call_operand.vmem [shape: f32[8,1], index: 3, kind: output, shape index: {}]
  %s4 = sld [smem:[#allocation0]]
  $region22: #{_pallas_forward.1} parent=0
    _
  %s6 = ssub.s32 1, %s4
  %s7 = scalar_select 0, %s6, %s4
  %8 = sst [smem:[#allocation2]] %s2
  // Predicated region
  $region2: #{_pallas_forward.1} parent=0 // pred_check
    _
  $region3: #{_pallas_forward.1} parent=0 // pred_check_branch
    %10 = sbr.rel (0) target = $region5
  $region4: #{_pallas_forward.1} parent=0 // pred_region
    _
  $region5: #{_pallas_forward.1} parent=0 // pred_fallthru
    _
  // Predicated region
  $region6: #{_pallas_forward.1} parent=0 // pred_check
    _
  $region7: #{_pallas_forward.1} parent=0 // pred_check_branch
    %12 = sbr.rel (0) target = $region9
  $region8: #{_pallas_forward.1} parent=0 // pred_region
    _
  $region9: #{_pallas_forward.1} parent=0 // pred_fallthru
    _
  // Predicated region
  $region10: #{_pallas_forward.1} parent=0 // pred_check
    _
  $region11: #{_pallas_forward.1} parent=0 // pred_check_branch
    %14 = sbr.rel (0) target = $region13
  $region12: #{_pallas_forward.1} parent=0 // pred_region
    _
  $region13: #{_pallas_forward.1} parent=0 // pred_fallthru
    _
  %v15 = vld [vmem:[%s0] sm:$0xff]
  %v16 = vld [vmem:[%s1] sm:$0xff]
  %v17 = vld [vmem:[%s1 + $0x8] sm:$0xff]
  %v18 = vld [vmem:[%s1 + $0x10] sm:$0xff]
  %v19 = vld [vmem:[%s1 + $0x18] sm:$0xff]
  %s20 = sld [smem:[#allocation2]]
  %v21 = vstv %s20
  %vm22 = vcmask 261120
  %v24 = vsel %vm22, %v15, 0
  %26 = vmatpush.msra.mxu0 0.0
  %27 = vmatpush.msra.mxu0 0.0
  %28 = vmatpush.msra.mxu0 0.0
  %29 = vmatpush.msra.mxu0 0.0
  %30 = vmatpush.msra.mxu0 0.0
  %31 = vmatpush.msra.mxu0 0.0
  %32 = vmatpush.msra.mxu0 0.0
  %33 = vmatpush.msra.mxu0 0.0
  %34 = vmatpush.msra.mxu0 0.0
  %35 = vmatpush.msra.mxu0 0.0
  %36 = vmatpush.msra.mxu0 0.0
  %37 = vmatpush.msra.mxu0 0.0
  %38 = vmatpush.msra.mxu0 %v19
  %39 = vmatpush.msra.mxu0 %v18
  %40 = vmatpush.msra.mxu0 %v17
  %41 = vmatpush.msra.mxu0 %v16
  %42 = vmatmul.f32.gmra.mxu0 %v24
  %v43 = vpop.f32.mrf.mxu0
  %v44 = vadd.f32 %v21, %v43
  %45 = vdwg.mxu0
  %vm46 = vcmask 7168
  %47 = vst.msk [vmem:[%s3] sm:$0xff] %vm46, %v44
  // Predicated region
  $region14: #{_pallas_forward.1} parent=0 // pred_check
    _
  $region15: #{_pallas_forward.1} parent=0 // pred_check_branch
    %49 = sbr.rel (0) target = $region17
  $region16: #{_pallas_forward.1} parent=0 // pred_region
    _
  $region17: #{_pallas_forward.1} parent=0 // pred_fallthru
    _
  // Predicated region
  $region18: #{_pallas_forward.1} parent=0 // pred_check
    _
  $region19: #{_pallas_forward.1} parent=0 // pred_check_branch
    %51 = sbr.rel (0) target = $region21
  $region20: #{_pallas_forward.1} parent=0 // pred_region
    _
  $region21: #{_pallas_forward.1} parent=0 // pred_fallthru
    _

</llo_original>
